<compile_context>
chip_gen: v7x
topology: tpu7x:2x2x1
jax: 0.10.0
libtpu: 0.0.40
codegen_flags: <defaults>
</compile_context>

<pallas_src>
import functools

import jax
import jax.numpy as jnp
from jax import lax
from jax.experimental import pallas as pl
from jax.experimental.pallas import tpu as pltpu


LANE = 128  # vreg lane width; node / feature / hidden / class dims padded to this


def _round_up(n, m):
    return ((n + m - 1) // m) * m


def _pad2(v, rows, cols, value=0.0):
    return jnp.pad(v, ((0, rows - v.shape[0]), (0, cols - v.shape[1])),
                   constant_values=value)


# ---------------------------------------------------------------------------
# Kernel: whole GCN forward on VMEM-resident, lane-dense tiles.
# ---------------------------------------------------------------------------
def gcn_kernel(a_ref, x_ref, w1_ref, b1_ref, w2_ref, b2_ref, out_ref):
    """Fused two-layer GCN + log_softmax.

    a_ref  : [Np, Np] f32   normalized adjacency (zero padded, lane-dense)
    x_ref  : [Np, Fp] f32   node features (zero-padded lanes)
    w1_ref : [Fp, Dp] bf16
    b1_ref : [1,  Dp] f32
    w2_ref : [Dp, Cp] bf16
    b2_ref : [1,  Cp] f32   padded class lanes hold -1e30 (pre-masked bias)
    out_ref: [Np, Cp] f32   log-softmax; padded rows/lanes are junk (sliced off)
    """
    a = a_ref[...]
    x = x_ref[...]

    # ---- layer 1: relu( (A_hat @ X) @ W1 + b1 ) -- aggregate-then-project ----
    ax = jnp.dot(a, x, preferred_element_type=jnp.float32)                   # [Np, Fp] f32
    h = jnp.dot(ax.astype(jnp.bfloat16), w1_ref[...],
                preferred_element_type=jnp.float32) + b1_ref[...]            # [Np, Dp] f32
    h = jnp.maximum(h, 0.0)

    # F.dropout(x, training=self.training): identity in eval mode.
    # TODO(synk): training-mode dropout (pltpu.prng_random_bits mask) not emitted.

    # ---- layer 2: A_hat @ (h @ W2) + b2 -- project-then-aggregate (C <= dim) ----
    hw2 = jnp.dot(h.astype(jnp.bfloat16), w2_ref[...],
                  preferred_element_type=jnp.float32)                        # [Np, Cp] f32
    # b2 is pre-masked with -1e30 on padded class lanes -> they vanish in softmax.
    h2 = jnp.dot(a, hw2, preferred_element_type=jnp.float32) + b2_ref[...]   # [Np, Cp] f32

    # ---- numerically stable log_softmax over class lanes ----
    m = jnp.max(h2, axis=1, keepdims=True)
    s = h2 - m
    lse = jnp.log(jnp.sum(jnp.exp(s), axis=1, keepdims=True))
    out_ref[...] = s - lse


# ---------------------------------------------------------------------------
# One-time preparation (hoisted out of the per-call forward path).
# ---------------------------------------------------------------------------
def prepare_params(w1, b1, w2, b2):
    """Pad / cast parameters once; cache the result alongside the params."""
    f_in, dim = w1.shape
    c = w2.shape[1]
    fp, dp, cp = _round_up(f_in, LANE), _round_up(dim, LANE), _round_up(c, LANE)

    w1_p = _pad2(w1, fp, dp).astype(jnp.bfloat16)
    w2_p = _pad2(w2, dp, cp).astype(jnp.bfloat16)
    b1_p = _pad2(b1, 1, dp).astype(jnp.float32)
    # Pre-masked bias: padded class lanes get -1e30 so the in-kernel bias add
    # already masks them before log_softmax (no iota/select in the kernel).
    b2_p = _pad2(b2.astype(jnp.float32), 1, cp, value=-1e30)
    return (w1_p, b1_p, w2_p, b2_p), c


def prepare_graph(a_hat, x):
    """Pad / cast the (fixed) graph once: lane-dense A_hat, padded features."""
    n, f_in = x.shape
    np_ = _round_up(n, LANE)          # lane-dense A_hat on both dims
    fp = _round_up(f_in, LANE)
    a_p = _pad2(a_hat, np_, np_).astype(jnp.float32)
    x_p = _pad2(x, np_, fp).astype(jnp.float32)
    return a_p, x_p, n


# ---------------------------------------------------------------------------
# Forward: single fused pallas_call on pre-padded operands + output slice.
# ---------------------------------------------------------------------------
@functools.partial(jax.jit, static_argnames=("n", "c"))
def gcn_forward(a_p, x_p, w1_p, b1_p, w2_p, b2_p, *, n, c):
    np_, fp = x_p.shape
    dp = w1_p.shape[1]
    cp = w2_p.shape[1]

    flops = (2 * np_ * np_ * fp + 2 * np_ * fp * dp
             + 2 * np_ * dp * cp + 2 * np_ * np_ * cp)
    bytes_accessed = int(sum(int(v.size) * v.dtype.itemsize
                             for v in (a_p, x_p, w1_p, b1_p, w2_p, b2_p))
                         + np_ * cp * 4)

    vmem = pl.BlockSpec(memory_space=pltpu.MemorySpace.VMEM)
    out_padded = pl.pallas_call(
        gcn_kernel,
        out_shape=jax.ShapeDtypeStruct((np_, cp), jnp.float32),
        in_specs=[vmem] * 6,
        out_specs=vmem,
        cost_estimate=pl.CostEstimate(
            flops=flops, transcendentals=np_ * cp, bytes_accessed=bytes_accessed),
    )(a_p, x_p, w1_p, b1_p, w2_p, b2_p)
    return out_padded[:n, :c]


# ---------------------------------------------------------------------------
# Graph normalization + pure-JAX references.
# ---------------------------------------------------------------------------
def build_norm_adj(edge_index, num_nodes):
    """Dense D^{-1/2} (A + I) D^{-1/2} matching PyG gcn_norm (add_remaining_self_loops)."""
    src = edge_index[0]
    dst = edge_index[1]
    adj = jnp.zeros((num_nodes, num_nodes), jnp.float32).at[dst, src].add(1.0)
    # Only nodes WITHOUT an existing self-loop get one (no double-counting).
    diag = jnp.diagonal(adj)
    adj = adj + jnp.diag(jnp.where(diag > 0.0, 0.0, 1.0))
    deg = jnp.sum(adj, axis=1)
    dinv = jnp.where(deg > 0.0, lax.rsqrt(deg), 0.0)
    return dinv[:, None] * adj * dinv[None, :]


def ref_forward_f32(a_hat, x, w1, b1, w2, b2):
    h = jnp.maximum(a_hat @ (x @ w1) + b1, 0.0)
    h2 = a_hat @ (h @ w2) + b2
    return jax.nn.log_softmax(h2, axis=1)


def ref_forward_mixed(a_hat, x, w1, b1, w2, b2):
    """Pure-JAX mirror of the kernel math (f32 aggregation, bf16 projections)."""
    bf, f32 = jnp.bfloat16, jnp.float32
    ax = jnp.dot(a_hat, x, preferred_element_type=f32)
    h = jnp.maximum(
        jnp.dot(ax.astype(bf), w1.astype(bf), preferred_element_type=f32) + b1, 0.0)
    hw2 = jnp.dot(h.astype(bf), w2.astype(bf), preferred_element_type=f32)
    h2 = jnp.dot(a_hat, hw2, preferred_element_type=f32) + b2
    return jax.nn.log_softmax(h2, axis=1)


if __name__ == "__main__":
    # Small shapes consistent with the module: N nodes, F input features,
    # hidden dim=16, num_classes=4.
    N, F_IN, DIM, C, E = 16, 8, 16, 4, 40

    key = jax.random.PRNGKey(0)
    kx, ke, kw1, kw2 = jax.random.split(key, 4)

    # Node features and a random directed edge list [2, E].
    x = jax.random.normal(kx, (N, F_IN), dtype=jnp.float32)
    edge_index = jax.random.randint(ke, (2, E), 0, N, dtype=jnp.int32)

    # Deterministic parameter init (PyG GCNConv: glorot weights, zero bias).
    def glorot(k, shape):
        lim = jnp.sqrt(6.0 / (shape[0] + shape[1]))
        return jax.random.uniform(k, shape, jnp.float32, -lim, lim)

    w1 = glorot(kw1, (F_IN, DIM))
    b1 = jnp.zeros((1, DIM), jnp.float32)
    w2 = glorot(kw2, (DIM, C))
    b2 = jnp.zeros((1, C), jnp.float32)

    a_hat = build_norm_adj(edge_index, N)

    # One-time preparation (would be cached across forward calls in real use).
    (w1_p, b1_p, w2_p, b2_p), c = prepare_params(w1, b1, w2, b2)
    a_p, x_p, n = prepare_graph(a_hat, x)

    out = gcn_forward(a_p, x_p, w1_p, b1_p, w2_p, b2_p, n=n, c=c)
    out = jax.block_until_ready(out)

    assert out.shape == (N, C)

    # Check against a reference mirroring the kernel's mixed precision.
    exp_mixed = ref_forward_mixed(a_hat, x, w1, b1, w2, b2)
    assert jnp.allclose(out, exp_mixed, atol=2e-2, rtol=2e-2), "mismatch vs mixed-precision reference"

    # Check against the full-f32 PyTorch-equivalent math.
    exp_f32 = ref_forward_f32(a_hat, x, w1, b1, w2, b2)
    assert jnp.allclose(out, exp_f32, atol=1e-1, rtol=1e-1), "mismatch vs f32 reference"

    print("KERNEL_OK")
</pallas_src>

<mosaic_0001>
module attributes {stable_mosaic.version = 11 : i64} {
  func.func @gcn_kernel(%arg0: memref<128x128xf32, #tpu.memory_space<vmem>>, %arg1: memref<128x128xf32, #tpu.memory_space<vmem>>, %arg2: memref<128x128xbf16, #tpu.memory_space<vmem>>, %arg3: memref<1x128xf32, #tpu.memory_space<vmem>>, %arg4: memref<128x128xbf16, #tpu.memory_space<vmem>>, %arg5: memref<1x128xf32, #tpu.memory_space<vmem>>, %arg6: memref<128x128xf32, #tpu.memory_space<vmem>>) attributes {dimension_semantics = [], scalar_prefetch = 0 : i64, scratch_operands = 0 : i64, tpu.core_type = #tpu.core_type<tc>} {
    %c0 = arith.constant 0 : index
    %c0_0 = arith.constant 0 : index
    %0 = vector.load %arg0[%c0, %c0_0] : memref<128x128xf32, #tpu.memory_space<vmem>>, vector<128x128xf32>
    %c0_1 = arith.constant 0 : index
    %c0_2 = arith.constant 0 : index
    %1 = vector.load %arg1[%c0_1, %c0_2] : memref<128x128xf32, #tpu.memory_space<vmem>>, vector<128x128xf32>
    %cst = arith.constant dense<0.000000e+00> : vector<128x128xf32>
    %2 = tpu.matmul %0, %1, %cst {dimension_numbers = #tpu.dot_dimension_numbers<[1], [0], [0], [1], [0, 0, 1, 1], [], []>} : vector<128x128xf32>, vector<128x128xf32>, vector<128x128xf32> -> vector<128x128xf32>
    %3 = arith.truncf %2 : vector<128x128xf32> to vector<128x128xbf16>
    %c0_3 = arith.constant 0 : index
    %c0_4 = arith.constant 0 : index
    %4 = vector.load %arg2[%c0_3, %c0_4] : memref<128x128xbf16, #tpu.memory_space<vmem>>, vector<128x128xbf16>
    %cst_5 = arith.constant dense<0.000000e+00> : vector<128x128xf32>
    %5 = tpu.matmul %3, %4, %cst_5 {dimension_numbers = #tpu.dot_dimension_numbers<[1], [0], [0], [1], [0, 0, 1, 1], [], []>} : vector<128x128xbf16>, vector<128x128xbf16>, vector<128x128xf32> -> vector<128x128xf32>
    %c0_6 = arith.constant 0 : index
    %c0_7 = arith.constant 0 : index
    %6 = vector.load %arg3[%c0_6, %c0_7] : memref<1x128xf32, #tpu.memory_space<vmem>>, vector<1x128xf32>
    %7 = vector.broadcast %6 : vector<1x128xf32> to vector<128x128xf32>
    %8 = arith.addf %5, %7 : vector<128x128xf32>
    %cst_8 = arith.constant 0.000000e+00 : f32
    %9 = vector.broadcast %cst_8 : f32 to vector<128x128xf32>
    %10 = arith.maximumf %8, %9 : vector<128x128xf32>
    %11 = arith.truncf %10 : vector<128x128xf32> to vector<128x128xbf16>
    %c0_9 = arith.constant 0 : index
    %c0_10 = arith.constant 0 : index
    %12 = vector.load %arg4[%c0_9, %c0_10] : memref<128x128xbf16, #tpu.memory_space<vmem>>, vector<128x128xbf16>
    %cst_11 = arith.constant dense<0.000000e+00> : vector<128x128xf32>
    %13 = tpu.matmul %11, %12, %cst_11 {dimension_numbers = #tpu.dot_dimension_numbers<[1], [0], [0], [1], [0, 0, 1, 1], [], []>} : vector<128x128xbf16>, vector<128x128xbf16>, vector<128x128xf32> -> vector<128x128xf32>
    %cst_12 = arith.constant dense<0.000000e+00> : vector<128x128xf32>
    %14 = tpu.matmul %0, %13, %cst_12 {dimension_numbers = #tpu.dot_dimension_numbers<[1], [0], [0], [1], [0, 0, 1, 1], [], []>} : vector<128x128xf32>, vector<128x128xf32>, vector<128x128xf32> -> vector<128x128xf32>
    %c0_13 = arith.constant 0 : index
    %c0_14 = arith.constant 0 : index
    %15 = vector.load %arg5[%c0_13, %c0_14] : memref<1x128xf32, #tpu.memory_space<vmem>>, vector<1x128xf32>
    %16 = vector.broadcast %15 : vector<1x128xf32> to vector<128x128xf32>
    %17 = arith.addf %14, %16 : vector<128x128xf32>
    %cst_15 = arith.constant dense<0xFF800000> : vector<128xf32>
    %18 = vector.multi_reduction <maximumf>, %17, %cst_15 [1] : vector<128x128xf32> to vector<128xf32>
    %19 = vector.shape_cast %18 : vector<128xf32> to vector<128x1xf32>
    %20 = vector.broadcast %19 : vector<128x1xf32> to vector<128x128xf32>
    %21 = arith.subf %17, %20 : vector<128x128xf32>
    %22 = math.exp %21 : vector<128x128xf32>
    %cst_16 = arith.constant dense<0.000000e+00> : vector<128xf32>
    %23 = vector.multi_reduction <add>, %22, %cst_16 [1] : vector<128x128xf32> to vector<128xf32>
    %24 = vector.shape_cast %23 : vector<128xf32> to vector<128x1xf32>
    %25 = math.log %24 : vector<128x1xf32>
    %26 = vector.broadcast %25 : vector<128x1xf32> to vector<128x128xf32>
    %27 = arith.subf %21, %26 : vector<128x128xf32>
    %c0_17 = arith.constant 0 : index
    %c0_18 = arith.constant 0 : index
    %28 = vector.load %arg6[%c0_17, %c0_18] : memref<128x128xf32, #tpu.memory_space<vmem>>, vector<128x128xf32>
    tpu.vector_store %arg6[%c0_17, %c0_18], %27 {strides = array<i32>} : memref<128x128xf32, #tpu.memory_space<vmem>>, vector<128x128xf32>,
    return
  }
}

</mosaic_0001>

<llo_original>
// kernel: gcn_forward.1
$region0: #{gcn_forward.1}
  #allocation0 [shape = 'u32[]', space=smem, size = 0x4, offset = 0x4, fixed_abs, tag = 'smem constant byte address 0x4 - core index']
  #allocation1 [shape = 'u32[144,128]{1,0:T(1,128)}', space=vmem, size = 0x12000, scoped, tag = 'internal scratch']
  %s0 = inlined_call_operand.hbm [shape: f32[128,128], index: 0, kind: input, shape index: {}]
  %s1 = inlined_call_operand.hbm [shape: f32[128,128], index: 1, kind: input, shape index: {}]
  %s2 = inlined_call_operand.hbm [shape: bf16[128,128], index: 2, kind: input, shape index: {}]
  %s3 = inlined_call_operand.vmem [shape: f32[1,128], index: 3, kind: input, shape index: {}]
  %s4 = inlined_call_operand.hbm [shape: bf16[128,128], index: 4, kind: input, shape index: {}]
  %s5 = inlined_call_operand.vmem [shape: f32[1,128], index: 5, kind: input, shape index: {}]
  %s6 = inlined_call_operand.vmem [shape: f32[128,128], index: 6, kind: output, shape index: {}]
  %s7 = sld [smem:[#allocation0]]
  $region50: #{gcn_forward.1} parent=0
    _
  %s9 = ssub.s32 1, %s7
  %s10 = scalar_select 0, %s9, %s7
  $region1: #{gcn_forward.1} parent=0
    #allocation2 [shape = 'u8[65536]{0}', space=vmem, size = 0x10000, scoped, tag = 'input window, operand 0, single buffered']
    #allocation3 [shape = 's32[1]{0}', space=sflag, size = 0x4, scoped, tag = 'scoped memory for gcn_forward.1']
    #allocation4 [shape = 'u8[65536]{0}', space=vmem, size = 0x10000, scoped, tag = 'input window, operand 1, single buffered']
    #allocation5 [shape = 's32[1]{0}', space=sflag, size = 0x4, scoped, tag = 'scoped memory for gcn_forward.1']
    #allocation6 [shape = 'u8[32768]{0}', space=vmem, size = 0x8000, scoped, tag = 'input window, operand 2, single buffered']
    #allocation7 [shape = 'u8[32768]{0}', space=vmem, size = 0x8000, scoped, tag = 'input window, operand 4, single buffered']
    #allocation8 [shape = 's32[1]{0}', space=sflag, size = 0x4, scoped, tag = 'scoped memory for gcn_forward.1']
    %11 = vsyncpa [#allocation3], 0
    %12 = vsyncpa [#allocation5], 0
    %13 = vsyncpa [#allocation8], 0
    // Predicated region
    $region2: #{gcn_forward.1} parent=1 // pred_check
      _
    $region3: #{gcn_forward.1} parent=1 // pred_check_branch
      %15 = sbr.rel (0) target = $region5
    $region4: #{gcn_forward.1} parent=1 // pred_region
      %s17 = ssub.s32 2048, 2048
      %18 = vsyncadd [#allocation3], %s17
      %s19 = sshll.u32 [#allocation2], 4
      %s20 = int_to_ptr.vmem [resolvable:$true] %s19
      %25 = dma.hbm_to_vmem [thread:$0]  %s0, 2048, %s20, [#allocation3], 128, 128, 8
    $region5: #{gcn_forward.1} parent=1 // pred_fallthru
      _
    // Predicated region
    $region6: #{gcn_forward.1} parent=1 // pred_check
      _
    $region7: #{gcn_forward.1} parent=1 // pred_check_branch
      %27 = sbr.rel (0) target = $region9
    $region8: #{gcn_forward.1} parent=1 // pred_region
      %s29 = ssub.s32 2048, 2048
      %30 = vsyncadd [#allocation5], %s29
      %s31 = sshll.u32 [#allocation4], 4
      %s32 = int_to_ptr.vmem [resolvable:$true] %s31
      %37 = dma.hbm_to_vmem [thread:$0]  %s1, 2048, %s32, [#allocation5], 128, 128, 8
    $region9: #{gcn_forward.1} parent=1 // pred_fallthru
      _
    // Predicated region
    $region10: #{gcn_forward.1} parent=1 // pred_check
      _
    $region11: #{gcn_forward.1} parent=1 // pred_check_branch
      %39 = sbr.rel (0) target = $region13
    $region12: #{gcn_forward.1} parent=1 // pred_region
      %s41 = ssub.s32 1024, 1024
      %42 = vsyncadd [#allocation5], %s41
      %s43 = sshll.u32 [#allocation6], 4
      %s44 = int_to_ptr.vmem [resolvable:$true] %s43
      %49 = dma.hbm_to_vmem [thread:$0]  %s2, 1024, %s44, [#allocation5], 64, 64, 4
    $region13: #{gcn_forward.1} parent=1 // pred_fallthru
      _
    // Predicated region
    $region14: #{gcn_forward.1} parent=1 // pred_check
      _
    $region15: #{gcn_forward.1} parent=1 // pred_check_branch
      %51 = sbr.rel (0) target = $region17
    $region16: #{gcn_forward.1} parent=1 // pred_region
      _
    $region17: #{gcn_forward.1} parent=1 // pred_fallthru
      _
    // Predicated region
    $region18: #{gcn_forward.1} parent=1 // pred_check
      _
    $region19: #{gcn_forward.1} parent=1 // pred_check_branch
      %53 = sbr.rel (0) target = $region21
    $region20: #{gcn_forward.1} parent=1 // pred_region
      %s55 = ssub.s32 1024, 1024
      %56 = vsyncadd [#allocation8], %s55
      %s57 = sshll.u32 [#allocation7], 4
      %s58 = int_to_ptr.vmem [resolvable:$true] %s57
      %63 = dma.hbm_to_vmem [thread:$0]  %s4, 1024, %s58, [#allocation8], 64, 64, 4
    $region21: #{gcn_forward.1} parent=1 // pred_fallthru
      _
    // Predicated region
    $region22: #{gcn_forward.1} parent=1 // pred_check
      _
    $region23: #{gcn_forward.1} parent=1 // pred_check_branch
      %65 = sbr.rel (0) target = $region25
    $region24: #{gcn_forward.1} parent=1 // pred_region
      _
    $region25: #{gcn_forward.1} parent=1 // pred_fallthru
      _
    // Predicated region
    $region26: #{gcn_forward.1} parent=1 // pred_check
      _
    $region27: #{gcn_forward.1} parent=1 // pred_check_branch
      %67 = sbr.rel (0) target = $region29
    $region28: #{gcn_forward.1} parent=1 // pred_region
      %68 = dma.done [#allocation3], 2048
    $region29: #{gcn_forward.1} parent=1 // pred_fallthru
      _
    // Predicated region
    $region30: #{gcn_forward.1} parent=1 // pred_check
      _
    $region31: #{gcn_forward.1} parent=1 // pred_check_branch
      %70 = sbr.rel (0) target = $region33
    $region32: #{gcn_forward.1} parent=1 // pred_region
      %71 = dma.done [#allocation5], 2048
    $region33: #{gcn_forward.1} parent=1 // pred_fallthru
      _
    // Predicated region
    $region34: #{gcn_forward.1} parent=1 // pred_check
      _
    $region35: #{gcn_forward.1} parent=1 // pred_check_branch
      %73 = sbr.rel (0) target = $region37
    $region36: #{gcn_forward.1} parent=1 // pred_region
      %74 = dma.done [#allocation5], 1024
    $region37: #{gcn_forward.1} parent=1 // pred_fallthru
      _
    // Predicated region
    $region38: #{gcn_forward.1} parent=1 // pred_check
      _
    $region39: #{gcn_forward.1} parent=1 // pred_check_branch
      %76 = sbr.rel (0) target = $region41
    $region40: #{gcn_forward.1} parent=1 // pred_region
      %77 = dma.done [#allocation8], 1024
    $region41: #{gcn_forward.1} parent=1 // pred_fallthru
      _
    %v79 = vld [vmem:[#allocation2] sm:$0xff]
    %v80 = vld [vmem:[#allocation2 + $0x8] sm:$0xff]
    %v81 = vld [vmem:[#allocation2 + $0x10] sm:$0xff]
    %v82 = vld [vmem:[#allocation2 + $0x18] sm:$0xff]
    %v83 = vld [vmem:[#allocation2 + $0x20] sm:$0xff]
    %v84 = vld [vmem:[#allocation2 + $0x28] sm:$0xff]
    %v85 = vld [vmem:[#allocation2 + $0x30] sm:$0xff]
    %v86 = vld [vmem:[#allocation2 + $0x38] sm:$0xff]
    %v87 = vld [vmem:[#allocation2 + $0x40] sm:$0xff]
    %v88 = vld [vmem:[#allocation2 + $0x48] sm:$0xff]
    %v89 = vld [vmem:[#allocation2 + $0x50] sm:$0xff]
    %v90 = vld [vmem:[#allocation2 + $0x58] sm:$0xff]
    %v91 = vld [vmem:[#allocation2 + $0x60] sm:$0xff]
    %v92 = vld [vmem:[#allocation2 + $0x68] sm:$0xff]
    %v93 = vld [vmem:[#allocation2 + $0x70] sm:$0xff]
    %v94 = vld [vmem:[#allocation2 + $0x78] sm:$0xff]
    %v95 = vld [vmem:[#allocation4] sm:$0xff]
    %v96 = vld [vmem:[#allocation4 + $0x8] sm:$0xff]
    %v97 = vld [vmem:[#allocation4 + $0x10] sm:$0xff]
    %v98 = vld [vmem:[#allocation4 + $0x18] sm:$0xff]
    %v99 = vld [vmem:[#allocation4 + $0x20] sm:$0xff]
    %v100 = vld [vmem:[#allocation4 + $0x28] sm:$0xff]
    %v101 = vld [vmem:[#allocation4 + $0x30] sm:$0xff]
    %v102 = vld [vmem:[#allocation4 + $0x38] sm:$0xff]
    %v103 = vld [vmem:[#allocation4 + $0x40] sm:$0xff]
    %v104 = vld [vmem:[#allocation4 + $0x48] sm:$0xff]
    %v105 = vld [vmem:[#allocation4 + $0x50] sm:$0xff]
    %v106 = vld [vmem:[#allocation4 + $0x58] sm:$0xff]
    %v107 = vld [vmem:[#allocation4 + $0x60] sm:$0xff]
    %v108 = vld [vmem:[#allocation4 + $0x68] sm:$0xff]
    %v109 = vld [vmem:[#allocation4 + $0x70] sm:$0xff]
    %v110 = vld [vmem:[#allocation4 + $0x78] sm:$0xff]
    %111 = vmatprep.subr.mxu0 0.0
    %112 = vmatpush1.msra.mxu0 %v95
    %113 = vmatprep.subr.mxu0 0.0
    %114 = vmatpush1.msra.mxu0 %v96
    %115 = vmatprep.subr.mxu0 0.0
    %116 = vmatpush1.msra.mxu0 %v97
    %117 = vmatprep.subr.mxu0 0.0
    %118 = vmatpush1.msra.mxu0 %v98
    %119 = vmatprep.subr.mxu0 0.0
    %120 = vmatpush1.msra.mxu0 %v99
    %121 = vmatprep.subr.mxu0 0.0
    %122 = vmatpush1.msra.mxu0 %v100
    %123 = vmatprep.subr.mxu0 0.0
    %124 = vmatpush1.msra.mxu0 %v101
    %125 = vmatprep.subr.mxu0 0.0
    %126 = vmatpush1.msra.mxu0 %v102
    %127 = vmatprep.subr.mxu0 0.0
    %128 = vmatpush1.msra.mxu0 %v103
    %129 = vmatprep.subr.mxu0 0.0
    %130 = vmatpush1.msra.mxu0 %v104
    %131 = vmatprep.subr.mxu0 0.0
    %132 = vmatpush1.msra.mxu0 %v105
    %133 = vmatprep.subr.mxu0 0.0
    %134 = vmatpush1.msra.mxu0 %v106
    %135 = vmatprep.subr.mxu0 0.0
    %136 = vmatpush1.msra.mxu0 %v107
    %137 = vmatprep.subr.mxu0 0.0
    %138 = vmatpush1.msra.mxu0 %v108
    %139 = vmatprep.subr.mxu0 0.0
    %140 = vmatpush1.msra.mxu0 %v109
    %141 = vmatprep.subr.mxu0 0.0
    %142 = vmatpush1.msra.mxu0 %v110
    %143 = vmatprep.subr.mxu0 0.0
    %144 = vmatpush1.msra.mxu0 0.0
    %145 = vmatprep.subr.mxu0 0.0
    %146 = vmatpush1.msra.mxu0 0.0
    %147 = vmatprep.subr.mxu0 0.0
    %148 = vmatpush1.msra.mxu0 0.0
    %149 = vmatprep.subr.mxu0 0.0
    %150 = vmatpush1.msra.mxu0 0.0
    %151 = vmatprep.subr.mxu0 0.0
    %152 = vmatpush1.msra.mxu0 0.0
    %153 = vmatprep.subr.mxu0 0.0
    %154 = vmatpush1.msra.mxu0 0.0
    %155 = vmatprep.subr.mxu0 0.0
    %156 = vmatpush1.msra.mxu0 0.0
    %157 = vmatprep.subr.mxu0 0.0
    %158 = vmatpush1.msra.mxu0 0.0
    %159 = vmatprep.subr.mxu0 0.0
    %160 = vmatpush1.msra.mxu0 0.0
    %161 = vmatprep.subr.mxu0 0.0
    %162 = vmatpush1.msra.mxu0 0.0
    %163 = vmatprep.subr.mxu0 0.0
    %164 = vmatpush1.msra.mxu0 0.0
    %165 = vmatprep.subr.mxu0 0.0
    %166 = vmatpush1.msra.mxu0 0.0
    %167 = vmatprep.subr.mxu0 0.0
    %168 = vmatpush1.msra.mxu0 0.0
    %169 = vmatprep.subr.mxu0 0.0
    %170 = vmatpush1.msra.mxu0 0.0
    %171 = vmatprep.subr.mxu0 0.0
    %172 = vmatpush1.msra.mxu0 0.0
    %173 = vmatprep.subr.mxu0 0.0
    %174 = vmatpush1.msra.mxu0 0.0
    %175 = vmatprep.mubr.f32.mxu0 0.0
    %176 = vmatmul.mubr.f32.gmra.mrb[0].mxu0 %v79
    %v177 = vpop.f32.mrb[0].mxu0
    %v178 = vadd.f32 0.0, %v177
    %v179 = vpop.f32.mrb[0].mxu0
    %180 = vmatprep.mubr.f32.mxu0 0.0
    %181 = vmatmul.mubr.f32.gmra.mrb[0].mxu0 %v80
    %v182 = vpop.f32.mrb[0].mxu0
    %v183 = vadd.f32 0.0, %v182
    %v184 = vpop.f32.mrb[0].mxu0
    %185 = vmatprep.mubr.f32.mxu0 0.0
    %186 = vmatmul.mubr.f32.gmra.mrb[0].mxu0 %v81
    %v187 = vpop.f32.mrb[0].mxu0
    %v188 = vadd.f32 0.0, %v187
    %v189 = vpop.f32.mrb[0].mxu0
    %190 = vmatprep.mubr.f32.mxu0 0.0
    %191 = vmatmul.mubr.f32.gmra.mrb[0].mxu0 %v82
    %v192 = vpop.f32.mrb[0].mxu0
    %v193 = vadd.f32 0.0, %v192
    %v194 = vpop.f32.mrb[0].mxu0
    %195 = vmatprep.mubr.f32.mxu0 0.0
    %196 = vmatmul.mubr.f32.gmra.mrb[0].mxu0 %v83
    %v197 = vpop.f32.mrb[0].mxu0
    %v198 = vadd.f32 0.0, %v197
    %v199 = vpop.f32.mrb[0].mxu0
    %200 = vmatprep.mubr.f32.mxu0 0.0
    %201 = vmatmul.mubr.f32.gmra.mrb[0].mxu0 %v84
    %v202 = vpop.f32.mrb[0].mxu0
    %v203 = vadd.f32 0.0, %v202
    %v204 = vpop.f32.mrb[0].mxu0
    %205 = vmatprep.mubr.f32.mxu0 0.0
    %206 = vmatmul.mubr.f32.gmra.mrb[0].mxu0 %v85
    %v207 = vpop.f32.mrb[0].mxu0
    %v208 = vadd.f32 0.0, %v207
    %v209 = vpop.f32.mrb[0].mxu0
    %210 = vmatprep.mubr.f32.mxu0 0.0
    %211 = vmatmul.mubr.f32.gmra.mrb[0].mxu0 %v86
    %v212 = vpop.f32.mrb[0].mxu0
    %v213 = vadd.f32 0.0, %v212
    %v214 = vpop.f32.mrb[0].mxu0
    %215 = vmatprep.mubr.f32.mxu0 0.0
    %216 = vmatmul.mubr.f32.gmra.mrb[0].mxu0 %v87
    %v217 = vpop.f32.mrb[0].mxu0
    %v218 = vadd.f32 0.0, %v217
    %v219 = vpop.f32.mrb[0].mxu0
    %220 = vmatprep.mubr.f32.mxu0 0.0
    %221 = vmatmul.mubr.f32.gmra.mrb[0].mxu0 %v88
    %v222 = vpop.f32.mrb[0].mxu0
    %v223 = vadd.f32 0.0, %v222
    %v224 = vpop.f32.mrb[0].mxu0
    %225 = vmatprep.mubr.f32.mxu0 0.0
    %226 = vmatmul.mubr.f32.gmra.mrb[0].mxu0 %v89
    %v227 = vpop.f32.mrb[0].mxu0
    %v228 = vadd.f32 0.0, %v227
    %v229 = vpop.f32.mrb[0].mxu0
    %230 = vmatprep.mubr.f32.mxu0 0.0
    %231 = vmatmul.mubr.f32.gmra.mrb[0].mxu0 %v90
    %v232 = vpop.f32.mrb[0].mxu0
    %v233 = vadd.f32 0.0, %v232
    %v234 = vpop.f32.mrb[0].mxu0
    %235 = vmatprep.mubr.f32.mxu0 0.0
    %236 = vmatmul.mubr.f32.gmra.mrb[0].mxu0 %v91
    %v237 = vpop.f32.mrb[0].mxu0
    %v238 = vadd.f32 0.0, %v237
    %v239 = vpop.f32.mrb[0].mxu0
    %240 = vmatprep.mubr.f32.mxu0 0.0
    %241 = vmatmul.mubr.f32.gmra.mrb[0].mxu0 %v92
    %v242 = vpop.f32.mrb[0].mxu0
    %v243 = vadd.f32 0.0, %v242
    %v244 = vpop.f32.mrb[0].mxu0
    %245 = vmatprep.mubr.f32.mxu0 0.0
    %246 = vmatmul.mubr.f32.gmra.mrb[0].mxu0 %v93
    %v247 = vpop.f32.mrb[0].mxu0
    %v248 = vadd.f32 0.0, %v247
    %v249 = vpop.f32.mrb[0].mxu0
    %250 = vmatprep.mubr.f32.mxu0 0.0
    %251 = vmatmul.mubr.f32.gmra.mrb[0].mxu0 %v94
    %v252 = vpop.f32.mrb[0].mxu0
    %v253 = vadd.f32 0.0, %v252
    %v254 = vpop.f32.mrb[0].mxu0
    %255 = vdwg.mxu0
    %v256 = vpack.c.bf16 %v183, %v178
    %v257 = vpack.c.bf16 %v193, %v188
    %v258 = vpack.c.bf16 %v203, %v198
    %v259 = vpack.c.bf16 %v213, %v208
    %v260 = vpack.c.bf16 %v223, %v218
    %v261 = vpack.c.bf16 %v233, %v228
    %v262 = vpack.c.bf16 %v243, %v238
    %v263 = vpack.c.bf16 %v253, %v248
    %v264 = vld [vmem:[#allocation6] sm:$0xf]
    %v265 = vld [vmem:[#allocation6 + $0x4] sm:$0xf]
    %v266 = vld [vmem:[#allocation6 + $0x8] sm:$0xf]
    %v267 = vld [vmem:[#allocation6 + $0xc] sm:$0xf]
    %v268 = vld [vmem:[#allocation6 + $0x10] sm:$0xf]
    %v269 = vld [vmem:[#allocation6 + $0x14] sm:$0xf]
    %v270 = vld [vmem:[#allocation6 + $0x18] sm:$0xf]
    %v271 = vld [vmem:[#allocation6 + $0x1c] sm:$0xf]
    %v272 = vld [vmem:[#allocation6 + $0x20] sm:$0xf]
    %v273 = vld [vmem:[#allocation6 + $0x24] sm:$0xf]
    %v274 = vld [vmem:[#allocation6 + $0x28] sm:$0xf]
    %v275 = vld [vmem:[#allocation6 + $0x2c] sm:$0xf]
    %v276 = vld [vmem:[#allocation6 + $0x30] sm:$0xf]
    %v277 = vld [vmem:[#allocation6 + $0x34] sm:$0xf]
    %v278 = vld [vmem:[#allocation6 + $0x38] sm:$0xf]
    %v279 = vld [vmem:[#allocation6 + $0x3c] sm:$0xf]
    %v280 = vld [vmem:[%s3] sm:$0x1]
    %v282 = vlaneseq
    %v283 = vshrl.u32 %v282, 7
    %v284 = vsub.s32 0, %v283
    %v285 = vrot.slane %v280, %v284
    %v303 = vunpack.c.l.b16 %v264
    %v304 = vunpack.c.l.b16 %v265
    %v305 = vunpack.c.l.b16 %v266
    %v306 = vunpack.c.l.b16 %v267
    %v307 = vunpack.c.l.b16 %v268
    %v308 = vunpack.c.l.b16 %v269
    %v309 = vunpack.c.l.b16 %v270
    %v310 = vunpack.c.l.b16 %v271
    %v311 = vunpack.c.l.b16 %v272
    %v312 = vunpack.c.l.b16 %v273
    %v313 = vunpack.c.l.b16 %v274
    %v314 = vunpack.c.l.b16 %v275
    %v315 = vunpack.c.l.b16 %v276
    %v316 = vunpack.c.l.b16 %v277
    %v317 = vunpack.c.l.b16 %v278
    %v318 = vunpack.c.l.b16 %v279
    %v319 = vpack.c.b16 %v304, %v303
    %v320 = vpack.c.b16 %v306, %v305
    %v321 = vpack.c.b16 %v308, %v307
    %v322 = vpack.c.b16 %v310, %v309
    %v323 = vpack.c.b16 %v312, %v311
    %v324 = vpack.c.b16 %v314, %v313
    %v325 = vpack.c.b16 %v316, %v315
    %v326 = vpack.c.b16 %v318, %v317
    %335 = vmatprep.subr.bf16.mxu0 0
    %336 = vmatpush1.bf16.msra.mxu0 %v319
    %337 = vmatprep.subr.bf16.mxu0 0
    %338 = vmatpush1.bf16.msra.mxu0 %v320
    %339 = vmatprep.subr.bf16.mxu0 0
    %340 = vmatpush1.bf16.msra.mxu0 %v321
    %341 = vmatprep.subr.bf16.mxu0 0
    %342 = vmatpush1.bf16.msra.mxu0 %v322
    %343 = vmatprep.subr.bf16.mxu0 0
    %344 = vmatpush1.bf16.msra.mxu0 %v323
    %345 = vmatprep.subr.bf16.mxu0 0
    %346 = vmatpush1.bf16.msra.mxu0 %v324
    %347 = vmatprep.subr.bf16.mxu0 0
    %348 = vmatpush1.bf16.msra.mxu0 %v325
    %349 = vmatprep.subr.bf16.mxu0 0
    %350 = vmatpush1.bf16.msra.mxu0 %v326
    %351 = vmatprep.subr.bf16.mxu0 0
    %352 = vmatpush1.bf16.msra.mxu0 0
    %353 = vmatprep.subr.bf16.mxu0 0
    %354 = vmatpush1.bf16.msra.mxu0 0
    %355 = vmatprep.subr.bf16.mxu0 0
    %356 = vmatpush1.bf16.msra.mxu0 0
    %357 = vmatprep.subr.bf16.mxu0 0
    %358 = vmatpush1.bf16.msra.mxu0 0
    %359 = vmatprep.subr.bf16.mxu0 0
    %360 = vmatpush1.bf16.msra.mxu0 0
    %361 = vmatprep.subr.bf16.mxu0 0
    %362 = vmatpush1.bf16.msra.mxu0 0
    %363 = vmatprep.subr.bf16.mxu0 0
    %364 = vmatpush1.bf16.msra.mxu0 0
    %365 = vmatprep.subr.bf16.mxu0 0
    %366 = vmatpush1.bf16.msra.mxu0 0
    %367 = vmatprep.mubr.bf16.mxu0 0
    %368 = vmatmul.mubr.bf16.gmra.mrb[0].mxu0 %v256
    %v369 = vpop.f32.mrb[0].mxu0
    %v370 = vadd.f32 %v285, %v369
    %v371 = vpop.f32.mrb[0].mxu0
    %v372 = vpop.f32.mrb[0].mxu0
    %v373 = vadd.f32 %v285, %v372
    %v374 = vpop.f32.mrb[0].mxu0
    %375 = vmatprep.mubr.bf16.mxu0 0
    %376 = vmatmul.mubr.bf16.gmra.mrb[0].mxu0 %v257
    %v377 = vpop.f32.mrb[0].mxu0
    %v378 = vadd.f32 %v285, %v377
    %v379 = vpop.f32.mrb[0].mxu0
    %v380 = vpop.f32.mrb[0].mxu0
    %v381 = vadd.f32 %v285, %v380
    %v382 = vpop.f32.mrb[0].mxu0
    %383 = vmatprep.mubr.bf16.mxu0 0
    %384 = vmatmul.mubr.bf16.gmra.mrb[0].mxu0 %v258
    %v385 = vpop.f32.mrb[0].mxu0
    %v386 = vadd.f32 %v285, %v385
    %v387 = vpop.f32.mrb[0].mxu0
    %v388 = vpop.f32.mrb[0].mxu0
    %v389 = vadd.f32 %v285, %v388
    %v390 = vpop.f32.mrb[0].mxu0
    %391 = vmatprep.mubr.bf16.mxu0 0
    %392 = vmatmul.mubr.bf16.gmra.mrb[0].mxu0 %v259
    %v393 = vpop.f32.mrb[0].mxu0
    %v394 = vadd.f32 %v285, %v393
    %v395 = vpop.f32.mrb[0].mxu0
    %v396 = vpop.f32.mrb[0].mxu0
    %v397 = vadd.f32 %v285, %v396
    %v398 = vpop.f32.mrb[0].mxu0
    %399 = vmatprep.mubr.bf16.mxu0 0
    %400 = vmatmul.mubr.bf16.gmra.mrb[0].mxu0 %v260
    %v401 = vpop.f32.mrb[0].mxu0
    %v402 = vadd.f32 %v285, %v401
    %v403 = vpop.f32.mrb[0].mxu0
    %v404 = vpop.f32.mrb[0].mxu0
    %v405 = vadd.f32 %v285, %v404
    %v406 = vpop.f32.mrb[0].mxu0
    %407 = vmatprep.mubr.bf16.mxu0 0
    %408 = vmatmul.mubr.bf16.gmra.mrb[0].mxu0 %v261
    %v409 = vpop.f32.mrb[0].mxu0
    %v410 = vadd.f32 %v285, %v409
    %v411 = vpop.f32.mrb[0].mxu0
    %v412 = vpop.f32.mrb[0].mxu0
    %v413 = vadd.f32 %v285, %v412
    %v414 = vpop.f32.mrb[0].mxu0
    %415 = vmatprep.mubr.bf16.mxu0 0
    %416 = vmatmul.mubr.bf16.gmra.mrb[0].mxu0 %v262
    %v417 = vpop.f32.mrb[0].mxu0
    %v418 = vadd.f32 %v285, %v417
    %v419 = vpop.f32.mrb[0].mxu0
    %v420 = vpop.f32.mrb[0].mxu0
    %v421 = vadd.f32 %v285, %v420
    %v422 = vpop.f32.mrb[0].mxu0
    %423 = vmatprep.mubr.bf16.mxu0 0
    %424 = vmatmul.mubr.bf16.gmra.mrb[0].mxu0 %v263
    %v425 = vpop.f32.mrb[0].mxu0
    %v426 = vadd.f32 %v285, %v425
    %v427 = vpop.f32.mrb[0].mxu0
    %v428 = vpop.f32.mrb[0].mxu0
    %v429 = vadd.f32 %v285, %v428
    %v430 = vpop.f32.mrb[0].mxu0
    %431 = vdwg.mxu0
    %v432 = vmax.f32 %v370, 0.0
    %v433 = vmax.f32 %v373, 0.0
    %v434 = vmax.f32 %v378, 0.0
    %v435 = vmax.f32 %v381, 0.0
    %v436 = vmax.f32 %v386, 0.0
    %v437 = vmax.f32 %v389, 0.0
    %v438 = vmax.f32 %v394, 0.0
    %v439 = vmax.f32 %v397, 0.0
    %v440 = vmax.f32 %v402, 0.0
    %v441 = vmax.f32 %v405, 0.0
    %v442 = vmax.f32 %v410, 0.0
    %v443 = vmax.f32 %v413, 0.0
    %v444 = vmax.f32 %v418, 0.0
    %v445 = vmax.f32 %v421, 0.0
    %v446 = vmax.f32 %v426, 0.0
    %v447 = vmax.f32 %v429, 0.0
    %v448 = vpack.c.bf16 %v433, %v432
    %v449 = vpack.c.bf16 %v435, %v434
    %v450 = vpack.c.bf16 %v437, %v436
    %v451 = vpack.c.bf16 %v439, %v438
    %v452 = vpack.c.bf16 %v441, %v440
    %v453 = vpack.c.bf16 %v443, %v442
    %v454 = vpack.c.bf16 %v445, %v444
    %v455 = vpack.c.bf16 %v447, %v446
    %v456 = vld [vmem:[#allocation7] sm:$0xf]
    %v457 = vld [vmem:[#allocation7 + $0x4] sm:$0xf]
    %v458 = vld [vmem:[#allocation7 + $0x8] sm:$0xf]
    %v459 = vld [vmem:[#allocation7 + $0xc] sm:$0xf]
    %v460 = vld [vmem:[#allocation7 + $0x10] sm:$0xf]
    %v461 = vld [vmem:[#allocation7 + $0x14] sm:$0xf]
    %v462 = vld [vmem:[#allocation7 + $0x18] sm:$0xf]
    %v463 = vld [vmem:[#allocation7 + $0x1c] sm:$0xf]
    %v464 = vld [vmem:[#allocation7 + $0x20] sm:$0xf]
    %v465 = vld [vmem:[#allocation7 + $0x24] sm:$0xf]
    %v466 = vld [vmem:[#allocation7 + $0x28] sm:$0xf]
    %v467 = vld [vmem:[#allocation7 + $0x2c] sm:$0xf]
    %v468 = vld [vmem:[#allocation7 + $0x30] sm:$0xf]
    %v469 = vld [vmem:[#allocation7 + $0x34] sm:$0xf]
    %v470 = vld [vmem:[#allocation7 + $0x38] sm:$0xf]
    %v471 = vld [vmem:[#allocation7 + $0x3c] sm:$0xf]
    %v488 = vunpack.c.l.b16 %v456
    %v489 = vunpack.c.l.b16 %v457
    %v490 = vunpack.c.l.b16 %v458
    %v491 = vunpack.c.l.b16 %v459
    %v492 = vunpack.c.l.b16 %v460
    %v493 = vunpack.c.l.b16 %v461
    %v494 = vunpack.c.l.b16 %v462
    %v495 = vunpack.c.l.b16 %v463
    %v496 = vunpack.c.l.b16 %v464
    %v497 = vunpack.c.l.b16 %v465
    %v498 = vunpack.c.l.b16 %v466
    %v499 = vunpack.c.l.b16 %v467
    %v500 = vunpack.c.l.b16 %v468
    %v501 = vunpack.c.l.b16 %v469
    %v502 = vunpack.c.l.b16 %v470
    %v503 = vunpack.c.l.b16 %v471
    %v504 = vpack.c.b16 %v489, %v488
    %v505 = vpack.c.b16 %v491, %v490
    %v506 = vpack.c.b16 %v493, %v492
    %v507 = vpack.c.b16 %v495, %v494
    %v508 = vpack.c.b16 %v497, %v496
    %v509 = vpack.c.b16 %v499, %v498
    %v510 = vpack.c.b16 %v501, %v500
    %v511 = vpack.c.b16 %v503, %v502
    %520 = vmatprep.subr.bf16.mxu0 0
    %521 = vmatpush1.bf16.msra.mxu0 %v504
    %522 = vmatprep.subr.bf16.mxu0 0
    %523 = vmatpush1.bf16.msra.mxu0 %v505
    %524 = vmatprep.subr.bf16.mxu0 0
    %525 = vmatpush1.bf16.msra.mxu0 %v506
    %526 = vmatprep.subr.bf16.mxu0 0
    %527 = vmatpush1.bf16.msra.mxu0 %v507
    %528 = vmatprep.subr.bf16.mxu0 0
    %529 = vmatpush1.bf16.msra.mxu0 %v508
    %530 = vmatprep.subr.bf16.mxu0 0
    %531 = vmatpush1.bf16.msra.mxu0 %v509
    %532 = vmatprep.subr.bf16.mxu0 0
    %533 = vmatpush1.bf16.msra.mxu0 %v510
    %534 = vmatprep.subr.bf16.mxu0 0
    %535 = vmatpush1.bf16.msra.mxu0 %v511
    %536 = vmatprep.subr.bf16.mxu0 0
    %537 = vmatpush1.bf16.msra.mxu0 0
    %538 = vmatprep.subr.bf16.mxu0 0
    %539 = vmatpush1.bf16.msra.mxu0 0
    %540 = vmatprep.subr.bf16.mxu0 0
    %541 = vmatpush1.bf16.msra.mxu0 0
    %542 = vmatprep.subr.bf16.mxu0 0
    %543 = vmatpush1.bf16.msra.mxu0 0
    %544 = vmatprep.subr.bf16.mxu0 0
    %545 = vmatpush1.bf16.msra.mxu0 0
    %546 = vmatprep.subr.bf16.mxu0 0
    %547 = vmatpush1.bf16.msra.mxu0 0
    %548 = vmatprep.subr.bf16.mxu0 0
    %549 = vmatpush1.bf16.msra.mxu0 0
    %550 = vmatprep.subr.bf16.mxu0 0
    %551 = vmatpush1.bf16.msra.mxu0 0
    %552 = vmatprep.mubr.bf16.mxu0 0
    %553 = vmatmul.mubr.bf16.gmra.mrb[0].mxu0 %v448
    %v554 = vpop.f32.mrb[0].mxu0
    %v555 = vadd.f32 0.0, %v554
    %v556 = vpop.f32.mrb[0].mxu0
    %v557 = vpop.f32.mrb[0].mxu0
    %v558 = vadd.f32 0.0, %v557
    %v559 = vpop.f32.mrb[0].mxu0
    %560 = vmatprep.mubr.bf16.mxu0 0
    %561 = vmatmul.mubr.bf16.gmra.mrb[0].mxu0 %v449
    %v562 = vpop.f32.mrb[0].mxu0
    %v563 = vadd.f32 0.0, %v562
    %v564 = vpop.f32.mrb[0].mxu0
    %v565 = vpop.f32.mrb[0].mxu0
    %v566 = vadd.f32 0.0, %v565
    %v567 = vpop.f32.mrb[0].mxu0
    %568 = vmatprep.mubr.bf16.mxu0 0
    %569 = vmatmul.mubr.bf16.gmra.mrb[0].mxu0 %v450
    %v570 = vpop.f32.mrb[0].mxu0
    %v571 = vadd.f32 0.0, %v570
    %v572 = vpop.f32.mrb[0].mxu0
    %v573 = vpop.f32.mrb[0].mxu0
    %v574 = vadd.f32 0.0, %v573
    %v575 = vpop.f32.mrb[0].mxu0
    %576 = vmatprep.mubr.bf16.mxu0 0
    %577 = vmatmul.mubr.bf16.gmra.mrb[0].mxu0 %v451
    %v578 = vpop.f32.mrb[0].mxu0
    %v579 = vadd.f32 0.0, %v578
    %v580 = vpop.f32.mrb[0].mxu0
    %v581 = vpop.f32.mrb[0].mxu0
    %v582 = vadd.f32 0.0, %v581
    %v583 = vpop.f32.mrb[0].mxu0
    %584 = vmatprep.mubr.bf16.mxu0 0
    %585 = vmatmul.mubr.bf16.gmra.mrb[0].mxu0 %v452
    %v586 = vpop.f32.mrb[0].mxu0
    %v587 = vadd.f32 0.0, %v586
    %v588 = vpop.f32.mrb[0].mxu0
    %v589 = vpop.f32.mrb[0].mxu0
    %v590 = vadd.f32 0.0, %v589
    %v591 = vpop.f32.mrb[0].mxu0
    %592 = vmatprep.mubr.bf16.mxu0 0
    %593 = vmatmul.mubr.bf16.gmra.mrb[0].mxu0 %v453
    %v594 = vpop.f32.mrb[0].mxu0
    %v595 = vadd.f32 0.0, %v594
    %v596 = vpop.f32.mrb[0].mxu0
    %v597 = vpop.f32.mrb[0].mxu0
    %v598 = vadd.f32 0.0, %v597
    %v599 = vpop.f32.mrb[0].mxu0
    %600 = vmatprep.mubr.bf16.mxu0 0
    %601 = vmatmul.mubr.bf16.gmra.mrb[0].mxu0 %v454
    %v602 = vpop.f32.mrb[0].mxu0
    %v603 = vadd.f32 0.0, %v602
    %v604 = vpop.f32.mrb[0].mxu0
    %v605 = vpop.f32.mrb[0].mxu0
    %v606 = vadd.f32 0.0, %v605
    %v607 = vpop.f32.mrb[0].mxu0
    %608 = vmatprep.mubr.bf16.mxu0 0
    %609 = vmatmul.mubr.bf16.gmra.mrb[0].mxu0 %v455
    %v610 = vpop.f32.mrb[0].mxu0
    %v611 = vadd.f32 0.0, %v610
    %v612 = vpop.f32.mrb[0].mxu0
    %v613 = vpop.f32.mrb[0].mxu0
    %v614 = vadd.f32 0.0, %v613
    %v615 = vpop.f32.mrb[0].mxu0
    %616 = vdwg.mxu0
    %v617 = vld [vmem:[%s5] sm:$0x1]
    %v619 = vlaneseq
    %v620 = vshrl.u32 %v619, 7
    %v621 = vsub.s32 0, %v620
    %v622 = vrot.slane %v617, %v621
    %624 = vmatprep.subr.mxu0 0.0
    %625 = vmatpush1.msra.mxu0 %v555
    %626 = vmatprep.subr.mxu0 0.0
    %627 = vmatpush1.msra.mxu0 %v558
    %628 = vmatprep.subr.mxu0 0.0
    %629 = vmatpush1.msra.mxu0 %v563
    %630 = vmatprep.subr.mxu0 0.0
    %631 = vmatpush1.msra.mxu0 %v566
    %632 = vmatprep.subr.mxu0 0.0
    %633 = vmatpush1.msra.mxu0 %v571
    %634 = vmatprep.subr.mxu0 0.0
    %635 = vmatpush1.msra.mxu0 %v574
    %636 = vmatprep.subr.mxu0 0.0
    %637 = vmatpush1.msra.mxu0 %v579
    %638 = vmatprep.subr.mxu0 0.0
    %639 = vmatpush1.msra.mxu0 %v582
    %640 = vmatprep.subr.mxu0 0.0
    %641 = vmatpush1.msra.mxu0 %v587
    %642 = vmatprep.subr.mxu0 0.0
    %643 = vmatpush1.msra.mxu0 %v590
    %644 = vmatprep.subr.mxu0 0.0
    %645 = vmatpush1.msra.mxu0 %v595
    %646 = vmatprep.subr.mxu0 0.0
    %647 = vmatpush1.msra.mxu0 %v598
    %648 = vmatprep.subr.mxu0 0.0
    %649 = vmatpush1.msra.mxu0 %v603
    %650 = vmatprep.subr.mxu0 0.0
    %651 = vmatpush1.msra.mxu0 %v606
    %652 = vmatprep.subr.mxu0 0.0
    %653 = vmatpush1.msra.mxu0 %v611
    %654 = vmatprep.subr.mxu0 0.0
    %655 = vmatpush1.msra.mxu0 %v614
    %656 = vmatprep.subr.mxu0 0.0
    %657 = vmatpush1.msra.mxu0 0.0
    %658 = vmatprep.subr.mxu0 0.0
    %659 = vmatpush1.msra.mxu0 0.0
    %660 = vmatprep.subr.mxu0 0.0
    %661 = vmatpush1.msra.mxu0 0.0
    %662 = vmatprep.subr.mxu0 0.0
    %663 = vmatpush1.msra.mxu0 0.0
    %664 = vmatprep.subr.mxu0 0.0
    %665 = vmatpush1.msra.mxu0 0.0
    %666 = vmatprep.subr.mxu0 0.0
    %667 = vmatpush1.msra.mxu0 0.0
    %668 = vmatprep.subr.mxu0 0.0
    %669 = vmatpush1.msra.mxu0 0.0
    %670 = vmatprep.subr.mxu0 0.0
    %671 = vmatpush1.msra.mxu0 0.0
    %672 = vmatprep.subr.mxu0 0.0
    %673 = vmatpush1.msra.mxu0 0.0
    %674 = vmatprep.subr.mxu0 0.0
    %675 = vmatpush1.msra.mxu0 0.0
    %676 = vmatprep.subr.mxu0 0.0
    %677 = vmatpush1.msra.mxu0 0.0
    %678 = vmatprep.subr.mxu0 0.0
    %679 = vmatpush1.msra.mxu0 0.0
    %680 = vmatprep.subr.mxu0 0.0
    %681 = vmatpush1.msra.mxu0 0.0
    %682 = vmatprep.subr.mxu0 0.0
    %683 = vmatpush1.msra.mxu0 0.0
    %684 = vmatprep.subr.mxu0 0.0
    %685 = vmatpush1.msra.mxu0 0.0
    %686 = vmatprep.subr.mxu0 0.0
    %687 = vmatpush1.msra.mxu0 0.0
    %688 = vmatprep.mubr.f32.mxu0 0.0
    %689 = vmatmul.mubr.f32.gmra.mrb[0].mxu0 %v79
    %v690 = vpop.f32.mrb[0].mxu0
    %v691 = vadd.f32 %v622, %v690
    %v692 = vpop.f32.mrb[0].mxu0
    %693 = vmatprep.mubr.f32.mxu0 0.0
    %694 = vmatmul.mubr.f32.gmra.mrb[0].mxu0 %v80
    %v695 = vpop.f32.mrb[0].mxu0
    %v696 = vadd.f32 %v622, %v695
    %v697 = vpop.f32.mrb[0].mxu0
    %698 = vmatprep.mubr.f32.mxu0 0.0
    %699 = vmatmul.mubr.f32.gmra.mrb[0].mxu0 %v81
    %v700 = vpop.f32.mrb[0].mxu0
    %v701 = vadd.f32 %v622, %v700
    %v702 = vpop.f32.mrb[0].mxu0
    %703 = vmatprep.mubr.f32.mxu0 0.0
    %704 = vmatmul.mubr.f32.gmra.mrb[0].mxu0 %v82
    %v705 = vpop.f32.mrb[0].mxu0
    %v706 = vadd.f32 %v622, %v705
    %v707 = vpop.f32.mrb[0].mxu0
    %708 = vmatprep.mubr.f32.mxu0 0.0
    %709 = vmatmul.mubr.f32.gmra.mrb[0].mxu0 %v83
    %v710 = vpop.f32.mrb[0].mxu0
    %v711 = vadd.f32 %v622, %v710
    %v712 = vpop.f32.mrb[0].mxu0
    %713 = vmatprep.mubr.f32.mxu0 0.0
    %714 = vmatmul.mubr.f32.gmra.mrb[0].mxu0 %v84
    %v715 = vpop.f32.mrb[0].mxu0
    %v716 = vadd.f32 %v622, %v715
    %v717 = vpop.f32.mrb[0].mxu0
    %718 = vmatprep.mubr.f32.mxu0 0.0
    %719 = vmatmul.mubr.f32.gmra.mrb[0].mxu0 %v85
    %v720 = vpop.f32.mrb[0].mxu0
    %v721 = vadd.f32 %v622, %v720
    %v722 = vpop.f32.mrb[0].mxu0
    %723 = vmatprep.mubr.f32.mxu0 0.0
    %724 = vmatmul.mubr.f32.gmra.mrb[0].mxu0 %v86
    %v725 = vpop.f32.mrb[0].mxu0
    %v726 = vadd.f32 %v622, %v725
    %v727 = vpop.f32.mrb[0].mxu0
    %728 = vmatprep.mubr.f32.mxu0 0.0
    %729 = vmatmul.mubr.f32.gmra.mrb[0].mxu0 %v87
    %v730 = vpop.f32.mrb[0].mxu0
    %v731 = vadd.f32 %v622, %v730
    %v732 = vpop.f32.mrb[0].mxu0
    %733 = vmatprep.mubr.f32.mxu0 0.0
    %734 = vmatmul.mubr.f32.gmra.mrb[0].mxu0 %v88
    %v735 = vpop.f32.mrb[0].mxu0
    %v736 = vadd.f32 %v622, %v735
    %v737 = vpop.f32.mrb[0].mxu0
    %738 = vmatprep.mubr.f32.mxu0 0.0
    %739 = vmatmul.mubr.f32.gmra.mrb[0].mxu0 %v89
    %v740 = vpop.f32.mrb[0].mxu0
    %v741 = vadd.f32 %v622, %v740
    %v742 = vpop.f32.mrb[0].mxu0
    %743 = vmatprep.mubr.f32.mxu0 0.0
    %744 = vmatmul.mubr.f32.gmra.mrb[0].mxu0 %v90
    %v745 = vpop.f32.mrb[0].mxu0
    %v746 = vadd.f32 %v622, %v745
    %v747 = vpop.f32.mrb[0].mxu0
    %748 = vmatprep.mubr.f32.mxu0 0.0
    %749 = vmatmul.mubr.f32.gmra.mrb[0].mxu0 %v91
    %v750 = vpop.f32.mrb[0].mxu0
    %v751 = vadd.f32 %v622, %v750
    %v752 = vpop.f32.mrb[0].mxu0
    %753 = vmatprep.mubr.f32.mxu0 0.0
    %754 = vmatmul.mubr.f32.gmra.mrb[0].mxu0 %v92
    %v755 = vpop.f32.mrb[0].mxu0
    %v756 = vadd.f32 %v622, %v755
    %v757 = vpop.f32.mrb[0].mxu0
    %758 = vmatprep.mubr.f32.mxu0 0.0
    %759 = vmatmul.mubr.f32.gmra.mrb[0].mxu0 %v93
    %v760 = vpop.f32.mrb[0].mxu0
    %v761 = vadd.f32 %v622, %v760
    %v762 = vpop.f32.mrb[0].mxu0
    %763 = vmatprep.mubr.f32.mxu0 0.0
    %764 = vmatmul.mubr.f32.gmra.mrb[0].mxu0 %v94
    %v765 = vpop.f32.mrb[0].mxu0
    %v766 = vadd.f32 %v622, %v765
    %v767 = vpop.f32.mrb[0].mxu0
    %768 = vdwg.mxu0
    %769 = vmax.xlane.f32.xlu0 %v691
    %v770 = vpop.xlane.xlu0 %769
    %771 = vmax.xlane.f32.xlu0 %v696
    %v772 = vpop.xlane.xlu0 %771
    %773 = vmax.xlane.f32.xlu0 %v701
    %v774 = vpop.xlane.xlu0 %773
    %775 = vmax.xlane.f32.xlu0 %v706
    %v776 = vpop.xlane.xlu0 %775
    %777 = vmax.xlane.f32.xlu0 %v711
    %v778 = vpop.xlane.xlu0 %777
    %779 = vmax.xlane.f32.xlu0 %v716
    %v780 = vpop.xlane.xlu0 %779
    %781 = vmax.xlane.f32.xlu0 %v721
    %v782 = vpop.xlane.xlu0 %781
    %783 = vmax.xlane.f32.xlu0 %v726
    %v784 = vpop.xlane.xlu0 %783
    %785 = vmax.xlane.f32.xlu0 %v731
    %v786 = vpop.xlane.xlu0 %785
    %787 = vmax.xlane.f32.xlu0 %v736
    %v788 = vpop.xlane.xlu0 %787
    %789 = vmax.xlane.f32.xlu0 %v741
    %v790 = vpop.xlane.xlu0 %789
    %791 = vmax.xlane.f32.xlu0 %v746
    %v792 = vpop.xlane.xlu0 %791
    %793 = vmax.xlane.f32.xlu0 %v751
    %v794 = vpop.xlane.xlu0 %793
    %795 = vmax.xlane.f32.xlu0 %v756
    %v796 = vpop.xlane.xlu0 %795
    %797 = vmax.xlane.f32.xlu0 %v761
    %v798 = vpop.xlane.xlu0 %797
    %799 = vmax.xlane.f32.xlu0 %v766
    %v800 = vpop.xlane.xlu0 %799
    %v801 = vsub.f32 %v691, %v770
    %v802 = vsub.f32 %v696, %v772
    %v803 = vsub.f32 %v701, %v774
    %v804 = vsub.f32 %v706, %v776
    %v805 = vsub.f32 %v711, %v778
    %v806 = vsub.f32 %v716, %v780
    %v807 = vsub.f32 %v721, %v782
    %v808 = vsub.f32 %v726, %v784
    %v809 = vsub.f32 %v731, %v786
    %v810 = vsub.f32 %v736, %v788
    %v811 = vsub.f32 %v741, %v790
    %v812 = vsub.f32 %v746, %v792
    %v813 = vsub.f32 %v751, %v794
    %v814 = vsub.f32 %v756, %v796
    %v815 = vsub.f32 %v761, %v798
    %v816 = vsub.f32 %v766, %v800
    %v817 = vmul.f32 %v801, 1.442695
    %v818 = vpow.pop %v817
    %v819 = vmul.f32 %v802, 1.442695
    %v820 = vpow.pop %v819
    %v821 = vmul.f32 %v803, 1.442695
    %v822 = vpow.pop %v821
    %v823 = vmul.f32 %v804, 1.442695
    %v824 = vpow.pop %v823
    %v825 = vmul.f32 %v805, 1.442695
    %v826 = vpow.pop %v825
    %v827 = vmul.f32 %v806, 1.442695
    %v828 = vpow.pop %v827
    %v829 = vmul.f32 %v807, 1.442695
    %v830 = vpow.pop %v829
    %v831 = vmul.f32 %v808, 1.442695
    %v832 = vpow.pop %v831
    %v833 = vmul.f32 %v809, 1.442695
    %v834 = vpow.pop %v833
    %v835 = vmul.f32 %v810, 1.442695
    %v836 = vpow.pop %v835
    %v837 = vmul.f32 %v811, 1.442695
    %v838 = vpow.pop %v837
    %v839 = vmul.f32 %v812, 1.442695
    %v840 = vpow.pop %v839
    %v841 = vmul.f32 %v813, 1.442695
    %v842 = vpow.pop %v841
    %v843 = vmul.f32 %v814, 1.442695
    %v844 = vpow.pop %v843
    %v845 = vmul.f32 %v815, 1.442695
    %v846 = vpow.pop %v845
    %v847 = vmul.f32 %v816, 1.442695
    %v848 = vpow.pop %v847
    %849 = vadd.xlane.f32.xlu0 %v818
    %v850 = vpop.xlane.xlu0 %849
    %851 = vadd.xlane.f32.xlu0 %v820
    %v852 = vpop.xlane.xlu0 %851
    %853 = vadd.xlane.f32.xlu0 %v822
    %v854 = vpop.xlane.xlu0 %853
    %855 = vadd.xlane.f32.xlu0 %v824
    %v856 = vpop.xlane.xlu0 %855
    %857 = vadd.xlane.f32.xlu0 %v826
    %v858 = vpop.xlane.xlu0 %857
    %859 = vadd.xlane.f32.xlu0 %v828
    %v860 = vpop.xlane.xlu0 %859
    %861 = vadd.xlane.f32.xlu0 %v830
    %v862 = vpop.xlane.xlu0 %861
    %863 = vadd.xlane.f32.xlu0 %v832
    %v864 = vpop.xlane.xlu0 %863
    %865 = vadd.xlane.f32.xlu0 %v834
    %v866 = vpop.xlane.xlu0 %865
    %867 = vadd.xlane.f32.xlu0 %v836
    %v868 = vpop.xlane.xlu0 %867
    %869 = vadd.xlane.f32.xlu0 %v838
    %v870 = vpop.xlane.xlu0 %869
    %871 = vadd.xlane.f32.xlu0 %v840
    %v872 = vpop.xlane.xlu0 %871
    %873 = vadd.xlane.f32.xlu0 %v842
    %v874 = vpop.xlane.xlu0 %873
    %875 = vadd.xlane.f32.xlu0 %v844
    %v876 = vpop.xlane.xlu0 %875
    %877 = vadd.xlane.f32.xlu0 %v846
    %v878 = vpop.xlane.xlu0 %877
    %879 = vadd.xlane.f32.xlu0 %v848
    %v880 = vpop.xlane.xlu0 %879
    %v881 = vlog2.pop %v850
    %v882 = vmul.f32 %v881, 0.6931472
    %v883 = vlog2.pop %v852
    %v884 = vmul.f32 %v883, 0.6931472
    %v885 = vlog2.pop %v854
    %v886 = vmul.f32 %v885, 0.6931472
    %v887 = vlog2.pop %v856
    %v888 = vmul.f32 %v887, 0.6931472
    %v889 = vlog2.pop %v858
    %v890 = vmul.f32 %v889, 0.6931472
    %v891 = vlog2.pop %v860
    %v892 = vmul.f32 %v891, 0.6931472
    %v893 = vlog2.pop %v862
    %v894 = vmul.f32 %v893, 0.6931472
    %v895 = vlog2.pop %v864
    %v896 = vmul.f32 %v895, 0.6931472
    %v897 = vlog2.pop %v866
    %v898 = vmul.f32 %v897, 0.6931472
    %v899 = vlog2.pop %v868
    %v900 = vmul.f32 %v899, 0.6931472
    %v901 = vlog2.pop %v870
    %v902 = vmul.f32 %v901, 0.6931472
    %v903 = vlog2.pop %v872
    %v904 = vmul.f32 %v903, 0.6931472
    %v905 = vlog2.pop %v874
    %v906 = vmul.f32 %v905, 0.6931472
    %v907 = vlog2.pop %v876
    %v908 = vmul.f32 %v907, 0.6931472
    %v909 = vlog2.pop %v878
    %v910 = vmul.f32 %v909, 0.6931472
    %v911 = vlog2.pop %v880
    %v912 = vmul.f32 %v911, 0.6931472
    %v913 = vsub.f32 %v801, %v882
    %v914 = vsub.f32 %v802, %v884
    %v915 = vsub.f32 %v803, %v886
    %v916 = vsub.f32 %v804, %v888
    %v917 = vsub.f32 %v805, %v890
    %v918 = vsub.f32 %v806, %v892
    %v919 = vsub.f32 %v807, %v894
    %v920 = vsub.f32 %v808, %v896
    %v921 = vsub.f32 %v809, %v898
    %v922 = vsub.f32 %v810, %v900
    %v923 = vsub.f32 %v811, %v902
    %v924 = vsub.f32 %v812, %v904
    %v925 = vsub.f32 %v813, %v906
    %v926 = vsub.f32 %v814, %v908
    %v927 = vsub.f32 %v815, %v910
    %v928 = vsub.f32 %v816, %v912
    %929 = vst [vmem:[%s6] sm:$0xff] %v913
    %930 = vst [vmem:[%s6 + $0x8] sm:$0xff] %v914
    %931 = vst [vmem:[%s6 + $0x10] sm:$0xff] %v915
    %932 = vst [vmem:[%s6 + $0x18] sm:$0xff] %v916
    %933 = vst [vmem:[%s6 + $0x20] sm:$0xff] %v917
    %934 = vst [vmem:[%s6 + $0x28] sm:$0xff] %v918
    %935 = vst [vmem:[%s6 + $0x30] sm:$0xff] %v919
    %936 = vst [vmem:[%s6 + $0x38] sm:$0xff] %v920
    %937 = vst [vmem:[%s6 + $0x40] sm:$0xff] %v921
    %938 = vst [vmem:[%s6 + $0x48] sm:$0xff] %v922
    %939 = vst [vmem:[%s6 + $0x50] sm:$0xff] %v923
    %940 = vst [vmem:[%s6 + $0x58] sm:$0xff] %v924
    %941 = vst [vmem:[%s6 + $0x60] sm:$0xff] %v925
    %942 = vst [vmem:[%s6 + $0x68] sm:$0xff] %v926
    %943 = vst [vmem:[%s6 + $0x70] sm:$0xff] %v927
    %944 = vst [vmem:[%s6 + $0x78] sm:$0xff] %v928
    // Predicated region
    $region42: #{gcn_forward.1} parent=1 // pred_check
      _
    $region43: #{gcn_forward.1} parent=1 // pred_check_branch
      %946 = sbr.rel (0) target = $region45
    $region44: #{gcn_forward.1} parent=1 // pred_region
      _
    $region45: #{gcn_forward.1} parent=1 // pred_fallthru
      _
    // Predicated region
    $region46: #{gcn_forward.1} parent=1 // pred_check
      _
    $region47: #{gcn_forward.1} parent=1 // pred_check_branch
      %948 = sbr.rel (0) target = $region49
    $region48: #{gcn_forward.1} parent=1 // pred_region
      _
    $region49: #{gcn_forward.1} parent=1 // pred_fallthru
      _
    %949 = vsyncpa [#allocation3], 1
    %950 = vsyncpa [#allocation5], 1
    %951 = vsyncpa [#allocation8], 1

</llo_original>
